<compile_context>
chip_gen: v5e
topology: v5e:2x2
jax: 0.10.0
libtpu: 0.0.40
codegen_flags: <defaults>
</compile_context>

<pallas_src>
import functools

import jax
import jax.numpy as jnp
from jax.experimental import pallas as pl
from jax.experimental.pallas import tpu as pltpu


def _fcn_classifier_kernel(x_ref, wconv_ref, bn2_b_ref,
                           wh_ref, bn1_b_ref,
                           wl_ref, bl_ref,
                           logits_ref, softmax_ref,
                           pool_acc,
                           *, pooling_type, hw_total, out_size):
    # Grid: (batch b [parallel], hw tile t [arbitrary/reduction]).
    t = pl.program_id(1)

    # --- init the per-batch pooling accumulator on the first HW tile ---
    @pl.when(t == 0)
    def _():
        if pooling_type == "max":
            pool_acc[...] = jnp.full_like(pool_acc, -jnp.inf)
        else:
            pool_acc[...] = jnp.zeros_like(pool_acc)

    # --- 1x1 conv (no bias), BN2 scale pre-folded into the bf16 weight:
    #     (K, C) @ (C, HW_TILE) on the MXU with f32 accumulation ---
    conv_raw = jnp.dot(wconv_ref[...], x_ref[...],
                       preferred_element_type=jnp.float32)          # (K, HW_TILE) f32

    if pooling_type == "max":
        # x -> relu(x + b) is monotone non-decreasing, so bias-add + ReLU are hoisted
        # past the spatial max to the finalize step: the hot loop is matmul + lane-max.
        pool_acc[...] = jnp.maximum(pool_acc[...],
                                    jnp.max(conv_raw, axis=1, keepdims=True))
    else:
        # mean pooling: ReLU is nonlinear -> apply folded bias + ReLU per element,
        # then accumulate the spatial sum (lane-axis reduction).
        conv = jnp.maximum(conv_raw + bn2_b_ref[...], 0.0)
        pool_acc[...] = pool_acc[...] + jnp.sum(conv, axis=1, keepdims=True)

    # --- finalize on the last HW tile: hidden layer, logits, softmax ---
    @pl.when(t == pl.num_programs(1) - 1)
    def _():
        if pooling_type == "max":
            pooled = jnp.maximum(pool_acc[...] + bn2_b_ref[...], 0.0)   # hoisted BN+ReLU
        else:
            pooled = pool_acc[...] * (1.0 / hw_total)                   # true mean over H*W

        # hidden Linear (no bias, BN1 scale folded into wh): contraction K is tiny ->
        # VPU broadcast-FMA + sublane reduction (skips the MXU and any (K,1)->(1,K)
        # relayout).  Dropout is identity in eval mode.
        hid = jnp.sum(pooled * wh_ref[...], axis=0, keepdims=True) + bn1_b_ref[...]
        hid = jnp.maximum(hid, 0.0)                                     # (1, HIDDEN)

        # logits Linear (with bias); wl/bl are zero-padded to a lane-dense width.
        lg = jnp.dot(hid, wl_ref[...],
                     preferred_element_type=jnp.float32) + bl_ref[...]  # (1, OUT_PAD)
        logits_ref[...] = lg

        # softmax over the real classes only (padding lanes masked out)
        lane = jax.lax.broadcasted_iota(jnp.int32, lg.shape, 1)
        valid = lane < out_size
        m = jnp.max(jnp.where(valid, lg, -jnp.inf), axis=-1, keepdims=True)
        e = jnp.where(valid, jnp.exp(lg - m), 0.0)
        denom = jnp.sum(e, axis=-1, keepdims=True)
        softmax_ref[...] = e * pl.reciprocal(denom, approx=True)


def _pick_hw_tile(hw, c, itemsize=2, cap_bytes=4 << 20):
    """Largest multiple-of-128 tile that divides HW and keeps one x block <= cap_bytes.

    The cap keeps double-buffered blocks comfortably inside v7x's 64 MiB VMEM while
    staying large enough to hit the HBM roofline.
    """
    if hw % 128 != 0:
        return hw                                  # single full-extent block
    cap_rows = max(128, ((cap_bytes // (c * itemsize)) // 128) * 128)
    tile = min(hw, cap_rows)
    tile -= tile % 128
    while hw % tile != 0:
        tile -= 128
    return tile


def fcn_classifier_forward(x_nchw, params, *, pooling_type="max", hw_tile=None):
    """Layout prep (free reshape, bf16 cast) + fused Pallas kernel call."""
    B, C, H, W = x_nchw.shape
    HW = H * W
    # NCHW -> (B, C, H*W) is a contiguous reshape: no transpose, no extra HBM pass.
    x = x_nchw.reshape(B, C, HW)
    if x.dtype != jnp.bfloat16:
        # Production callers should hand bf16 in directly to skip this cast pass.
        x = x.astype(jnp.bfloat16)

    out_size = int(params["out_size"])
    out_pad = params["wl"].shape[1]
    K = params["wconv"].shape[0]
    Hh = params["wh"].shape[1]

    if hw_tile is None:
        hw_tile = _pick_hw_tile(HW, C)
    assert hw_tile == HW or (hw_tile % 128 == 0 and HW % hw_tile == 0)
    n_hw = HW // hw_tile

    kernel = functools.partial(_fcn_classifier_kernel,
                               pooling_type=pooling_type,
                               hw_total=float(HW),
                               out_size=out_size)

    def full_spec(arr):
        zeros = (0,) * arr.ndim
        return pl.BlockSpec(arr.shape, lambda b, t: zeros)

    weights = (params["wconv"], params["bn2_bias"],
               params["wh"], params["bn1_bias"],
               params["wl"], params["bl"])

    in_specs = [pl.BlockSpec((None, C, hw_tile), lambda b, t: (b, 0, t))]
    in_specs += [full_spec(w) for w in weights]

    def out_spec():
        return pl.BlockSpec((None, 1, out_pad), lambda b, t: (b, 0, 0))

    flops = 2 * B * HW * C * K + 2 * B * K * Hh + 2 * B * Hh * out_pad
    bytes_accessed = int(x.size * x.dtype.itemsize
                         + sum(w.size * w.dtype.itemsize for w in weights)
                         + 2 * B * out_pad * 4)
    cost = pl.CostEstimate(flops=int(flops),
                           transcendentals=int(B * out_pad),
                           bytes_accessed=bytes_accessed)

    logits3, softmax3 = pl.pallas_call(
        kernel,
        out_shape=(jax.ShapeDtypeStruct((B, 1, out_pad), jnp.float32),
                   jax.ShapeDtypeStruct((B, 1, out_pad), jnp.float32)),
        grid_spec=pltpu.PrefetchScalarGridSpec(
            num_scalar_prefetch=0,
            grid=(B, n_hw),
            in_specs=in_specs,
            out_specs=(out_spec(), out_spec()),
            scratch_shapes=[pltpu.VMEM((K, 1), jnp.float32)]),
        compiler_params=pltpu.CompilerParams(
            dimension_semantics=("parallel", "arbitrary"),
            vmem_limit_bytes=32 * 1024 * 1024),
        cost_estimate=cost,
    )(x, *weights)

    logits = logits3.reshape(B, out_pad)[:, :out_size]
    logits_softmaxed = softmax3.reshape(B, out_pad)[:, :out_size]
    return logits, logits_softmaxed


def make_params(key, in_channels, classifier_conv_out, hidden_layer_size, output_size):
    """Deterministic synthetic parameters, PyTorch-shaped, folded / laid out for the kernel."""
    ks = jax.random.split(key, 12)
    eps = 1e-3
    out_pad = ((output_size + 127) // 128) * 128

    # Conv2d weight (K, C, 1, 1), no bias.
    wconv_pt = jax.random.normal(ks[0], (classifier_conv_out, in_channels, 1, 1), jnp.float32) * 0.1
    # BatchNorm2d (eval): fold running stats + affine; scale folded into the conv weight,
    # bias kept as a (K, 1) column.
    g2 = 1.0 + 0.1 * jax.random.normal(ks[1], (classifier_conv_out,), jnp.float32)
    b2 = 0.1 * jax.random.normal(ks[2], (classifier_conv_out,), jnp.float32)
    m2 = 0.1 * jax.random.normal(ks[3], (classifier_conv_out,), jnp.float32)
    v2 = jnp.abs(jax.random.normal(ks[4], (classifier_conv_out,), jnp.float32)) + 0.5
    s2 = g2 / jnp.sqrt(v2 + eps)
    wconv = (s2[:, None] * wconv_pt[:, :, 0, 0]).astype(jnp.bfloat16)   # (K, C) bf16, scale folded
    bn2_bias = (b2 - m2 * s2).reshape(-1, 1)                            # (K, 1) f32

    # hidden Linear weight (hidden, conv_out), no bias -> (conv_out, hidden) for
    # broadcast-FMA, with BatchNorm1d (eval) scale folded into the columns.
    wh_pt = jax.random.normal(ks[5], (hidden_layer_size, classifier_conv_out), jnp.float32) * 0.1
    g1 = 1.0 + 0.1 * jax.random.normal(ks[6], (hidden_layer_size,), jnp.float32)
    b1 = 0.1 * jax.random.normal(ks[7], (hidden_layer_size,), jnp.float32)
    m1 = 0.1 * jax.random.normal(ks[8], (hidden_layer_size,), jnp.float32)
    v1 = jnp.abs(jax.random.normal(ks[9], (hidden_layer_size,), jnp.float32)) + 0.5
    s1 = g1 / jnp.sqrt(v1 + eps)
    wh = jnp.transpose(wh_pt, (1, 0)) * s1[None, :]                     # (K, hidden) f32, scale folded
    bn1_bias = (b1 - m1 * s1).reshape(1, -1)                            # (1, hidden) f32

    # logits Linear (out, hidden) + bias (out,) -> (hidden, out_pad) / (1, out_pad),
    # zero-padded on the class axis so kernel stores are lane-dense.
    wl_pt = jax.random.normal(ks[10], (output_size, hidden_layer_size), jnp.float32) * 0.1
    bl_pt = 0.1 * jax.random.normal(ks[11], (output_size,), jnp.float32)
    wl = jnp.zeros((hidden_layer_size, out_pad), jnp.float32).at[:, :output_size].set(wl_pt.T)
    bl = jnp.zeros((1, out_pad), jnp.float32).at[:, :output_size].set(bl_pt)

    return dict(wconv=wconv, bn2_bias=bn2_bias,
                wh=wh, bn1_bias=bn1_bias,
                wl=wl, bl=bl, out_size=output_size)


def _reference_forward(x_nchw, params, pooling_type):
    """Pure-JAX reference (same folded params / bf16-rounded inputs) for validation."""
    hp = jax.lax.Precision.HIGHEST
    B, C, H, W = x_nchw.shape
    out_size = int(params["out_size"])
    x = x_nchw.reshape(B, C, H * W).astype(jnp.bfloat16).astype(jnp.float32)
    wconv = params["wconv"].astype(jnp.float32)                       # (K, C), BN scale folded
    conv_raw = jnp.einsum("kc,bcs->bks", wconv, x, precision=hp)
    conv = jnp.maximum(conv_raw + params["bn2_bias"][None], 0.0)
    if pooling_type == "max":
        pooled = jnp.max(conv, axis=2)                                # (B, K)
    else:
        pooled = jnp.mean(conv, axis=2)
    hid = jnp.dot(pooled, params["wh"], precision=hp) + params["bn1_bias"]
    hid = jnp.maximum(hid, 0.0)
    lg = jnp.dot(hid, params["wl"], precision=hp) + params["bl"]
    lg = lg[:, :out_size]
    return lg, jax.nn.softmax(lg, axis=1)


if __name__ == "__main__":
    # Module config: in_channels=4, classifier_conv_out=8, hidden_layer_size=32,
    # output_size=10, spatial_location_layer=[], dropout_drop_prob (eval -> identity).
    B, C, H, W = 2, 4, 16, 16
    conv_out, hidden, out_size = 8, 32, 10

    key = jax.random.PRNGKey(0)
    kx, kp = jax.random.split(key)
    x = jax.random.normal(kx, (B, C, H, W), jnp.float32)
    params = make_params(kp, C, conv_out, hidden, out_size)

    for pooling in ("max", "mean"):
        # hw_tile=128 forces a 2-step HW reduction so the accumulator path is exercised.
        logits, logits_softmaxed = fcn_classifier_forward(
            x, params, pooling_type=pooling, hw_tile=128)
        jax.block_until_ready((logits, logits_softmaxed))

        assert logits.shape == (B, out_size)
        assert logits_softmaxed.shape == (B, out_size)

        ref_logits, ref_sm = _reference_forward(x, params, pooling)
        assert jnp.allclose(logits, ref_logits, atol=1e-2, rtol=1e-2), pooling
        assert jnp.allclose(logits_softmaxed, ref_sm, atol=1e-2, rtol=1e-2), pooling

    print("KERNEL_OK")
</pallas_src>

<mosaic_0001>
module attributes {stable_mosaic.version = 11 : i64} {
  func.func @_fcn_classifier_kernel(%arg0: i32, %arg1: i32, %arg2: memref<1x4x128xbf16, #tpu.memory_space<vmem>>, %arg3: memref<8x4xbf16, #tpu.memory_space<vmem>>, %arg4: memref<8x1xf32, #tpu.memory_space<vmem>>, %arg5: memref<8x32xf32, #tpu.memory_space<vmem>>, %arg6: memref<1x32xf32, #tpu.memory_space<vmem>>, %arg7: memref<32x128xf32, #tpu.memory_space<vmem>>, %arg8: memref<1x128xf32, #tpu.memory_space<vmem>>, %arg9: memref<1x1x128xf32, #tpu.memory_space<vmem>>, %arg10: memref<1x1x128xf32, #tpu.memory_space<vmem>>, %arg11: memref<8x1xf32, #tpu.memory_space<vmem>>) attributes {dimension_semantics = [#tpu.dimension_semantics<parallel>, #tpu.dimension_semantics<arbitrary>], iteration_bounds = array<i64: 2, 2>, scalar_prefetch = 0 : i64, scratch_operands = 1 : i64, tpu.core_type = #tpu.core_type<tc>, window_params = [{transform_indices = @transform_0, window_bounds = array<i64: 1, 4, 128>}, {pipeline_mode = #tpu.pipeline_mode<synchronous>, transform_indices = @transform_1, window_bounds = array<i64: 8, 4>}, {pipeline_mode = #tpu.pipeline_mode<synchronous>, transform_indices = @transform_2, window_bounds = array<i64: 8, 1>}, {pipeline_mode = #tpu.pipeline_mode<synchronous>, transform_indices = @transform_3, window_bounds = array<i64: 8, 32>}, {pipeline_mode = #tpu.pipeline_mode<synchronous>, transform_indices = @transform_4, window_bounds = array<i64: 1, 32>}, {pipeline_mode = #tpu.pipeline_mode<synchronous>, transform_indices = @transform_5, window_bounds = array<i64: 32, 128>}, {pipeline_mode = #tpu.pipeline_mode<synchronous>, transform_indices = @transform_6, window_bounds = array<i64: 1, 128>}, {transform_indices = @transform_7, window_bounds = array<i64: 1, 1, 128>}, {transform_indices = @transform_8, window_bounds = array<i64: 1, 1, 128>}]} {
    %c0_i32 = arith.constant 0 : i32
    %0 = arith.cmpi eq, %arg1, %c0_i32 : i32
    %1 = arith.extui %0 : i1 to i32
    %c0_i32_0 = arith.constant 0 : i32
    %2 = arith.cmpi ne, %1, %c0_i32_0 : i32
    scf.if %2 {
      %cst_11 = arith.constant 0xFF800000 : f32
      %15 = vector.broadcast %cst_11 : f32 to vector<8x1xf32>
      %c0_12 = arith.constant 0 : index
      %c0_13 = arith.constant 0 : index
      %16 = vector.load %arg11[%c0_12, %c0_13] : memref<8x1xf32, #tpu.memory_space<vmem>>, vector<8x1xf32>
      tpu.vector_store %arg11[%c0_12, %c0_13], %15 {strides = array<i32>} : memref<8x1xf32, #tpu.memory_space<vmem>>, vector<8x1xf32>,
    } else {
    }
    %c0 = arith.constant 0 : index
    %c0_1 = arith.constant 0 : index
    %3 = vector.load %arg3[%c0, %c0_1] : memref<8x4xbf16, #tpu.memory_space<vmem>>, vector<8x4xbf16>
    %c0_2 = arith.constant 0 : index
    %c0_3 = arith.constant 0 : index
    %c0_4 = arith.constant 0 : index
    %4 = vector.load %arg2[%c0_2, %c0_3, %c0_4] : memref<1x4x128xbf16, #tpu.memory_space<vmem>>, vector<1x4x128xbf16>
    %5 = vector.shape_cast %4 : vector<1x4x128xbf16> to vector<4x128xbf16>
    %cst = arith.constant dense<0.000000e+00> : vector<8x128xf32>
    %6 = tpu.matmul %3, %5, %cst {dimension_numbers = #tpu.dot_dimension_numbers<[1], [0], [0], [1], [0, 0, 1, 1], [], []>} : vector<8x4xbf16>, vector<4x128xbf16>, vector<8x128xf32> -> vector<8x128xf32>
    %c0_5 = arith.constant 0 : index
    %c0_6 = arith.constant 0 : index
    %7 = vector.load %arg11[%c0_5, %c0_6] : memref<8x1xf32, #tpu.memory_space<vmem>>, vector<8x1xf32>
    %cst_7 = arith.constant dense<0xFF800000> : vector<8xf32>
    %8 = vector.multi_reduction <maximumf>, %6, %cst_7 [1] : vector<8x128xf32> to vector<8xf32>
    %9 = vector.shape_cast %8 : vector<8xf32> to vector<8x1xf32>
    %10 = arith.maximumf %7, %9 : vector<8x1xf32>
    %c0_8 = arith.constant 0 : index
    %c0_9 = arith.constant 0 : index
    %11 = vector.load %arg11[%c0_8, %c0_9] : memref<8x1xf32, #tpu.memory_space<vmem>>, vector<8x1xf32>
    tpu.vector_store %arg11[%c0_8, %c0_9], %10 {strides = array<i32>} : memref<8x1xf32, #tpu.memory_space<vmem>>, vector<8x1xf32>,
    %c1_i32 = arith.constant 1 : i32
    %12 = arith.cmpi eq, %arg1, %c1_i32 : i32
    %13 = arith.extui %12 : i1 to i32
    %c0_i32_10 = arith.constant 0 : i32
    %14 = arith.cmpi ne, %13, %c0_i32_10 : i32
    scf.if %14 {
      %c0_11 = arith.constant 0 : index
      %c0_12 = arith.constant 0 : index
      %15 = vector.load %arg11[%c0_11, %c0_12] : memref<8x1xf32, #tpu.memory_space<vmem>>, vector<8x1xf32>
      %c0_13 = arith.constant 0 : index
      %c0_14 = arith.constant 0 : index
      %16 = vector.load %arg4[%c0_13, %c0_14] : memref<8x1xf32, #tpu.memory_space<vmem>>, vector<8x1xf32>
      %17 = arith.addf %15, %16 : vector<8x1xf32>
      %cst_15 = arith.constant 0.000000e+00 : f32
      %18 = vector.broadcast %cst_15 : f32 to vector<8x1xf32>
      %19 = arith.maximumf %17, %18 : vector<8x1xf32>
      %c0_16 = arith.constant 0 : index
      %c0_17 = arith.constant 0 : index
      %20 = vector.load %arg5[%c0_16, %c0_17] : memref<8x32xf32, #tpu.memory_space<vmem>>, vector<8x32xf32>
      %21 = vector.broadcast %19 : vector<8x1xf32> to vector<8x32xf32>
      %22 = arith.mulf %21, %20 : vector<8x32xf32>
      %cst_18 = arith.constant dense<0.000000e+00> : vector<32xf32>
      %23 = vector.multi_reduction <add>, %22, %cst_18 [0] : vector<8x32xf32> to vector<32xf32>
      %24 = vector.shape_cast %23 : vector<32xf32> to vector<1x32xf32>
      %c0_19 = arith.constant 0 : index
      %c0_20 = arith.constant 0 : index
      %25 = vector.load %arg6[%c0_19, %c0_20] : memref<1x32xf32, #tpu.memory_space<vmem>>, vector<1x32xf32>
      %26 = arith.addf %24, %25 : vector<1x32xf32>
      %cst_21 = arith.constant 0.000000e+00 : f32
      %27 = vector.broadcast %cst_21 : f32 to vector<1x32xf32>
      %28 = arith.maximumf %26, %27 : vector<1x32xf32>
      %c0_22 = arith.constant 0 : index
      %c0_23 = arith.constant 0 : index
      %29 = vector.load %arg7[%c0_22, %c0_23] : memref<32x128xf32, #tpu.memory_space<vmem>>, vector<32x128xf32>
      %cst_24 = arith.constant dense<0.000000e+00> : vector<1x128xf32>
      %30 = tpu.matmul %28, %29, %cst_24 {dimension_numbers = #tpu.dot_dimension_numbers<[1], [0], [0], [1], [0, 0, 1, 1], [], []>} : vector<1x32xf32>, vector<32x128xf32>, vector<1x128xf32> -> vector<1x128xf32>
      %c0_25 = arith.constant 0 : index
      %c0_26 = arith.constant 0 : index
      %31 = vector.load %arg8[%c0_25, %c0_26] : memref<1x128xf32, #tpu.memory_space<vmem>>, vector<1x128xf32>
      %32 = arith.addf %30, %31 : vector<1x128xf32>
      %c0_27 = arith.constant 0 : index
      %c0_28 = arith.constant 0 : index
      %c0_29 = arith.constant 0 : index
      %33 = vector.load %arg9[%c0_27, %c0_28, %c0_29] : memref<1x1x128xf32, #tpu.memory_space<vmem>>, vector<1x1x128xf32>
      %34 = vector.shape_cast %33 : vector<1x1x128xf32> to vector<1x128xf32>
      %35 = vector.shape_cast %32 : vector<1x128xf32> to vector<1x1x128xf32>
      tpu.vector_store %arg9[%c0_27, %c0_28, %c0_29], %35 {strides = array<i32>} : memref<1x1x128xf32, #tpu.memory_space<vmem>>, vector<1x1x128xf32>,
      %36 = tpu.iota {dimensions = array<i32: 1>} : vector<1x128xi32>
      %c10_i32 = arith.constant 10 : i32
      %37 = vector.broadcast %c10_i32 : i32 to vector<1x128xi32>
      %38 = arith.cmpi slt, %36, %37 : vector<1x128xi32>
      %cst_30 = arith.constant 0xFF800000 : f32
      %39 = vector.broadcast %cst_30 : f32 to vector<1x128xf32>
      %40 = arith.select %38, %32, %39 : vector<1x128xi1>, vector<1x128xf32>
      %cst_31 = arith.constant dense<0xFF800000> : vector<1xf32>
      %41 = vector.multi_reduction <maximumf>, %40, %cst_31 [1] : vector<1x128xf32> to vector<1xf32>
      %42 = vector.shape_cast %41 : vector<1xf32> to vector<1x1xf32>
      %43 = vector.broadcast %42 : vector<1x1xf32> to vector<1x128xf32>
      %44 = arith.subf %32, %43 : vector<1x128xf32>
      %45 = math.exp %44 : vector<1x128xf32>
      %cst_32 = arith.constant 0.000000e+00 : f32
      %46 = vector.broadcast %cst_32 : f32 to vector<1x128xf32>
      %47 = arith.select %38, %45, %46 : vector<1x128xi1>, vector<1x128xf32>
      %cst_33 = arith.constant dense<0.000000e+00> : vector<1xf32>
      %48 = vector.multi_reduction <add>, %47, %cst_33 [1] : vector<1x128xf32> to vector<1xf32>
      %49 = vector.shape_cast %48 : vector<1xf32> to vector<1x1xf32>
      %50 = tpu.reciprocal %49 {approx = true} : vector<1x1xf32> -> vector<1x1xf32>
      %51 = vector.broadcast %50 : vector<1x1xf32> to vector<1x128xf32>
      %52 = arith.mulf %47, %51 : vector<1x128xf32>
      %c0_34 = arith.constant 0 : index
      %c0_35 = arith.constant 0 : index
      %c0_36 = arith.constant 0 : index
      %53 = vector.load %arg10[%c0_34, %c0_35, %c0_36] : memref<1x1x128xf32, #tpu.memory_space<vmem>>, vector<1x1x128xf32>
      %54 = vector.shape_cast %53 : vector<1x1x128xf32> to vector<1x128xf32>
      %55 = vector.shape_cast %52 : vector<1x128xf32> to vector<1x1x128xf32>
      tpu.vector_store %arg10[%c0_34, %c0_35, %c0_36], %55 {strides = array<i32>} : memref<1x1x128xf32, #tpu.memory_space<vmem>>, vector<1x1x128xf32>,
    } else {
    }
    return
  }
  func.func @transform_0(%arg0: i32, %arg1: i32) -> (i32, i32, i32) {
    %c0_i32 = arith.constant 0 : i32
    %c0_i32_0 = arith.constant 0 : i32
    return %arg0, %c0_i32, %arg1 : i32, i32, i32
  }
  func.func @transform_1(%arg0: i32, %arg1: i32) -> (i32, i32) {
    %c0_i32 = arith.constant 0 : i32
    %c0_i32_0 = arith.constant 0 : i32
    %c0_i32_1 = arith.constant 0 : i32
    return %c0_i32, %c0_i32_0 : i32, i32
  }
  func.func @transform_2(%arg0: i32, %arg1: i32) -> (i32, i32) {
    %c0_i32 = arith.constant 0 : i32
    %c0_i32_0 = arith.constant 0 : i32
    %c0_i32_1 = arith.constant 0 : i32
    return %c0_i32, %c0_i32_0 : i32, i32
  }
  func.func @transform_3(%arg0: i32, %arg1: i32) -> (i32, i32) {
    %c0_i32 = arith.constant 0 : i32
    %c0_i32_0 = arith.constant 0 : i32
    %c0_i32_1 = arith.constant 0 : i32
    return %c0_i32, %c0_i32_0 : i32, i32
  }
  func.func @transform_4(%arg0: i32, %arg1: i32) -> (i32, i32) {
    %c0_i32 = arith.constant 0 : i32
    %c0_i32_0 = arith.constant 0 : i32
    %c0_i32_1 = arith.constant 0 : i32
    return %c0_i32, %c0_i32_0 : i32, i32
  }
  func.func @transform_5(%arg0: i32, %arg1: i32) -> (i32, i32) {
    %c0_i32 = arith.constant 0 : i32
    %c0_i32_0 = arith.constant 0 : i32
    %c0_i32_1 = arith.constant 0 : i32
    return %c0_i32, %c0_i32_0 : i32, i32
  }
  func.func @transform_6(%arg0: i32, %arg1: i32) -> (i32, i32) {
    %c0_i32 = arith.constant 0 : i32
    %c0_i32_0 = arith.constant 0 : i32
    %c0_i32_1 = arith.constant 0 : i32
    return %c0_i32, %c0_i32_0 : i32, i32
  }
  func.func @transform_7(%arg0: i32, %arg1: i32) -> (i32, i32, i32) {
    %c0_i32 = arith.constant 0 : i32
    %c0_i32_0 = arith.constant 0 : i32
    %c0_i32_1 = arith.constant 0 : i32
    return %arg0, %c0_i32, %c0_i32_0 : i32, i32, i32
  }
  func.func @transform_8(%arg0: i32, %arg1: i32) -> (i32, i32, i32) {
    %c0_i32 = arith.constant 0 : i32
    %c0_i32_0 = arith.constant 0 : i32
    %c0_i32_1 = arith.constant 0 : i32
    return %arg0, %c0_i32, %c0_i32_0 : i32, i32, i32
  }
}

</mosaic_0001>

<llo_original>
// kernel: tpu_custom_call.1
$region0: #{tpu_custom_call.1}
  #allocation0 [shape = 'u32[]', space=smem, size = 0x4, offset = 0x4, fixed_abs, tag = 'smem constant byte address 0x4 - core index']
  #allocation1 [shape = 'u32[72,128]{1,0:T(1,128)}', space=vmem, size = 0x9000, scoped, tag = 'internal scratch']
  #allocation2 [shape = 'f32[8,1]{1,0:T(8,128)}', space=vmem, size = 0x1000, scoped, tag = 'scratch operand']
  %s0 = inlined_call_operand.vmem [shape: bf16[2,4,256], index: 0, kind: input, shape index: {}]
  %s1 = inlined_call_operand.vmem [shape: bf16[8,4], index: 1, kind: input, shape index: {}]
  %s2 = inlined_call_operand.vmem [shape: f32[8,1], index: 2, kind: input, shape index: {}]
  %s3 = inlined_call_operand.vmem [shape: f32[8,32], index: 3, kind: input, shape index: {}]
  %s4 = inlined_call_operand.vmem [shape: f32[1,32], index: 4, kind: input, shape index: {}]
  %s5 = inlined_call_operand.hbm [shape: f32[32,128], index: 5, kind: input, shape index: {}]
  %s6 = inlined_call_operand.vmem [shape: f32[1,128], index: 6, kind: input, shape index: {}]
  %s7 = inlined_call_operand.hbm [shape: f32[2,1,128], index: 7, kind: output, shape index: {0}]
  %s8 = inlined_call_operand.hbm [shape: f32[2,1,128], index: 8, kind: output, shape index: {1}]
  %9 = xla_tuple %s7, %s8
  %s10 = sld [smem:[#allocation0]]
  $region81: #{tpu_custom_call.1} parent=0
    _
  %s12 = ssub.s32 1, %s10
  %s13 = scalar_select 0, %s12, %s10
  $region1: #{tpu_custom_call.1} parent=0
    #allocation3 [shape = 'u8[16384]{0}', space=vmem, size = 0x4000, scoped, tag = 'input window, operand 5, single buffered']
    #allocation4 [shape = 's32[2]{0}', space=sflag, size = 0x8, scoped, tag = 'scoped memory for tpu_custom_call.1']
    #allocation5 [shape = 's32[2]{0}', space=sflag, size = 0x8, scoped, tag = 'scoped memory for tpu_custom_call.1']
    #allocation6 [shape = 'u8[1024]{0}', space=vmem, size = 0x400, scoped, tag = 'output window, operand 0']
    #allocation7 [shape = 'u8[1024]{0}', space=vmem, size = 0x400, scoped, tag = 'output window, operand 1']
    #allocation8 [shape = 's32[2]{0}', space=sflag, size = 0x8, scoped, tag = 'scoped memory for tpu_custom_call.1']
    %14 = vsyncpa [#allocation4], 0
    %15 = vsyncpa [#allocation5], 0
    %s16 = scalar_lea.sflag [#allocation5], 1
    %17 = vsyncpa %s16, 0
    %18 = vsyncpa [#allocation8], 0
    %s19 = scalar_lea.sflag [#allocation8], 1
    %20 = vsyncpa %s19, 0
    loop: start=0, step=1, limit=6
    $region2: #{tpu_custom_call.1} parent=1 // loop_pre_header
      _
    $region3: #{tpu_custom_call.1} parent=1 // loop_header
      %s22 = sphi 0, %s26
      %p23 = scmp.ge.s32.totalorder %s22, 6
      %s29 = sphi 0, %s41
      %s30 = sphi 0, %s37
      %s31 = sphi 0, %s29
      %s32 = sphi 0, %s30
      %s33 = sphi 0, %s31
      %s34 = sphi 0, %s32
      %s46 = sphi 0, %s48
      %s49 = sphi 0, %s46
      %s50 = sphi 0, %s49
      %s66 = sphi 0, %s50
      %s70 = sphi 0, %s70
      %s72 = sphi 0, %s70
      %s73 = sphi 0, %s72
      %s87 = sphi 0, %s73
      %s91 = sphi 0, %s91
      %s93 = sphi 0, %s91
      %s94 = sphi 0, %s93
      %s108 = sphi 0, %s94
      %s112 = sphi 0, %s112
      %s114 = sphi 0, %s112
      %s115 = sphi 0, %s114
      %s129 = sphi 0, %s115
      %s133 = sphi 0, %s133
      %s135 = sphi 0, %s133
      %s136 = sphi 0, %s135
      %s150 = sphi 0, %s136
      %s154 = sphi 0, %s154
      %s156 = sphi 0, %s154
      %s157 = sphi 0, %s156
      %s171 = sphi 0, %s157
      %s175 = sphi 0, %s175
      %s177 = sphi 0, %s175
      %s178 = sphi 0, %s177
      %s192 = sphi 0, %s178
      %s198 = sphi 0, %s200
      %s201 = sphi 0, %s198
      %s202 = sphi 0, %s201
      %s218 = sphi 0, %s202
      %s224 = sphi 0, %s226
      %s227 = sphi 0, %s224
      %s228 = sphi 0, %s227
      %s244 = sphi 0, %s228
    $region4: #{tpu_custom_call.1} parent=1 // loop_header_branch
      %25 = sbr.rel (%p23) target = $region8
    $region5: #{tpu_custom_call.1} parent=1 // loop_body
      %s27 = ssub.s32 %s22, 1
      %s28 = ssub.s32 %s22, 2
      %s35 = sadd.s32 1, %s30
      %p36 = scmp.ge.s32.totalorder %s35, 2
      %s37 = scalar_select %p36, 0, %s35
      %s38 = sadd.s32 1, %s29
      %s39 = scalar_select %p36, %s38, %s29
      %p40 = scmp.ge.s32.totalorder %s39, 2
      %s41 = scalar_select %p40, 0, %s39
      %s42 = ssub.s32 %s29, %s41
      %s43 = ssub.s32 %s30, %s37
      %s44 = sor.u32 %s42, %s43
      %p45 = scmp.eq.s32.totalorder %s44, 0
      %s47 = sadd.s32 %s46, 1
      %s48 = scalar_select %p45, %s46, %s47
      %p51 = pneg %p45
      %p52 = scmp.eq.s32.totalorder %s22, 3
      %p53 = por %p51, %p52
      %p54 = scmp.ne.s32.totalorder %s46, %s49
      %p55 = scmp.eq.s32.totalorder %s22, 0
      %p56 = por %p54, %p55
      %p57 = scmp.ne.s32.totalorder %s46, %s49
      %p58 = scmp.eq.s32.totalorder %s27, 3
      %p59 = por %p57, %p58
      %p60 = scmp.ne.s32.totalorder %s49, %s50
      %p61 = scmp.eq.s32.totalorder %s27, 0
      %p62 = por %p60, %p61
      %p63 = scmp.ne.s32.totalorder %s49, %s50
      %p64 = scmp.eq.s32.totalorder %s28, 3
      %p65 = por %p63, %p64
      %p67 = scmp.ne.s32.totalorder %s50, %s66
      %p68 = scmp.eq.s32.totalorder %s28, 0
      %p69 = por %p67, %p68
      %s71 = sadd.s32 %s70, 1
      %p74 = scmp.eq.s32.totalorder %s22, 3
      %p75 = scmp.ne.s32.totalorder %s70, %s72
      %p76 = scmp.eq.s32.totalorder %s22, 0
      %p77 = por %p75, %p76
      %p78 = scmp.ne.s32.totalorder %s70, %s72
      %p79 = scmp.eq.s32.totalorder %s27, 3
      %p80 = por %p78, %p79
      %p81 = scmp.ne.s32.totalorder %s72, %s73
      %p82 = scmp.eq.s32.totalorder %s27, 0
      %p83 = por %p81, %p82
      %p84 = scmp.ne.s32.totalorder %s72, %s73
      %p85 = scmp.eq.s32.totalorder %s28, 3
      %p86 = por %p84, %p85
      %p88 = scmp.ne.s32.totalorder %s73, %s87
      %p89 = scmp.eq.s32.totalorder %s28, 0
      %p90 = por %p88, %p89
      %s92 = sadd.s32 %s91, 1
      %p95 = scmp.eq.s32.totalorder %s22, 3
      %p96 = scmp.ne.s32.totalorder %s91, %s93
      %p97 = scmp.eq.s32.totalorder %s22, 0
      %p98 = por %p96, %p97
      %p99 = scmp.ne.s32.totalorder %s91, %s93
      %p100 = scmp.eq.s32.totalorder %s27, 3
      %p101 = por %p99, %p100
      %p102 = scmp.ne.s32.totalorder %s93, %s94
      %p103 = scmp.eq.s32.totalorder %s27, 0
      %p104 = por %p102, %p103
      %p105 = scmp.ne.s32.totalorder %s93, %s94
      %p106 = scmp.eq.s32.totalorder %s28, 3
      %p107 = por %p105, %p106
      %p109 = scmp.ne.s32.totalorder %s94, %s108
      %p110 = scmp.eq.s32.totalorder %s28, 0
      %p111 = por %p109, %p110
      %s113 = sadd.s32 %s112, 1
      %p116 = scmp.eq.s32.totalorder %s22, 3
      %p117 = scmp.ne.s32.totalorder %s112, %s114
      %p118 = scmp.eq.s32.totalorder %s22, 0
      %p119 = por %p117, %p118
      %p120 = scmp.ne.s32.totalorder %s112, %s114
      %p121 = scmp.eq.s32.totalorder %s27, 3
      %p122 = por %p120, %p121
      %p123 = scmp.ne.s32.totalorder %s114, %s115
      %p124 = scmp.eq.s32.totalorder %s27, 0
      %p125 = por %p123, %p124
      %p126 = scmp.ne.s32.totalorder %s114, %s115
      %p127 = scmp.eq.s32.totalorder %s28, 3
      %p128 = por %p126, %p127
      %p130 = scmp.ne.s32.totalorder %s115, %s129
      %p131 = scmp.eq.s32.totalorder %s28, 0
      %p132 = por %p130, %p131
      %s134 = sadd.s32 %s133, 1
      %p137 = scmp.eq.s32.totalorder %s22, 3
      %p138 = scmp.ne.s32.totalorder %s133, %s135
      %p139 = scmp.eq.s32.totalorder %s22, 0
      %p140 = por %p138, %p139
      %p141 = scmp.ne.s32.totalorder %s133, %s135
      %p142 = scmp.eq.s32.totalorder %s27, 3
      %p143 = por %p141, %p142
      %p144 = scmp.ne.s32.totalorder %s135, %s136
      %p145 = scmp.eq.s32.totalorder %s27, 0
      %p146 = por %p144, %p145
      %p147 = scmp.ne.s32.totalorder %s135, %s136
      %p148 = scmp.eq.s32.totalorder %s28, 3
      %p149 = por %p147, %p148
      %p151 = scmp.ne.s32.totalorder %s136, %s150
      %p152 = scmp.eq.s32.totalorder %s28, 0
      %p153 = por %p151, %p152
      %s155 = sadd.s32 %s154, 1
      %p158 = scmp.eq.s32.totalorder %s22, 3
      %p159 = scmp.ne.s32.totalorder %s154, %s156
      %p160 = scmp.eq.s32.totalorder %s22, 0
      %p161 = por %p159, %p160
      %p162 = scmp.ne.s32.totalorder %s154, %s156
      %p163 = scmp.eq.s32.totalorder %s27, 3
      %p164 = por %p162, %p163
      %p165 = scmp.ne.s32.totalorder %s156, %s157
      %p166 = scmp.eq.s32.totalorder %s27, 0
      %p167 = por %p165, %p166
      %p168 = scmp.ne.s32.totalorder %s156, %s157
      %p169 = scmp.eq.s32.totalorder %s28, 3
      %p170 = por %p168, %p169
      %p172 = scmp.ne.s32.totalorder %s157, %s171
      %p173 = scmp.eq.s32.totalorder %s28, 0
      %p174 = por %p172, %p173
      %s176 = sadd.s32 %s175, 1
      %p179 = scmp.eq.s32.totalorder %s22, 3
      %p180 = scmp.ne.s32.totalorder %s175, %s177
      %p181 = scmp.eq.s32.totalorder %s22, 0
      %p182 = por %p180, %p181
      %p183 = scmp.ne.s32.totalorder %s175, %s177
      %p184 = scmp.eq.s32.totalorder %s27, 3
      %p185 = por %p183, %p184
      %p186 = scmp.ne.s32.totalorder %s177, %s178
      %p187 = scmp.eq.s32.totalorder %s27, 0
      %p188 = por %p186, %p187
      %p189 = scmp.ne.s32.totalorder %s177, %s178
      %p190 = scmp.eq.s32.totalorder %s28, 3
      %p191 = por %p189, %p190
      %p193 = scmp.ne.s32.totalorder %s178, %s192
      %p194 = scmp.eq.s32.totalorder %s28, 0
      %p195 = por %p193, %p194
      %s196 = ssub.s32 %s29, %s41
      %p197 = scmp.eq.s32.totalorder %s196, 0
      %s199 = sadd.s32 %s198, 1
      %s200 = scalar_select %p197, %s198, %s199
      %p203 = pneg %p197
      %p204 = scmp.eq.s32.totalorder %s22, 3
      %p205 = por %p203, %p204
      %p206 = scmp.ne.s32.totalorder %s198, %s201
      %p207 = scmp.eq.s32.totalorder %s22, 0
      %p208 = por %p206, %p207
      %p209 = scmp.ne.s32.totalorder %s198, %s201
      %p210 = scmp.eq.s32.totalorder %s27, 3
      %p211 = por %p209, %p210
      %p212 = scmp.ne.s32.totalorder %s201, %s202
      %p213 = scmp.eq.s32.totalorder %s27, 0
      %p214 = por %p212, %p213
      %p215 = scmp.ne.s32.totalorder %s201, %s202
      %p216 = scmp.eq.s32.totalorder %s28, 3
      %p217 = por %p215, %p216
      %p219 = scmp.ne.s32.totalorder %s202, %s218
      %p220 = scmp.eq.s32.totalorder %s28, 0
      %p221 = por %p219, %p220
      %s222 = ssub.s32 %s29, %s41
      %p223 = scmp.eq.s32.totalorder %s222, 0
      %s225 = sadd.s32 %s224, 1
      %s226 = scalar_select %p223, %s224, %s225
      %p229 = pneg %p223
      %p230 = scmp.eq.s32.totalorder %s22, 3
      %p231 = por %p229, %p230
      %p232 = scmp.ne.s32.totalorder %s224, %s227
      %p233 = scmp.eq.s32.totalorder %s22, 0
      %p234 = por %p232, %p233
      %p235 = scmp.ne.s32.totalorder %s224, %s227
      %p236 = scmp.eq.s32.totalorder %s27, 3
      %p237 = por %p235, %p236
      %p238 = scmp.ne.s32.totalorder %s227, %s228
      %p239 = scmp.eq.s32.totalorder %s27, 0
      %p240 = por %p238, %p239
      %p241 = scmp.ne.s32.totalorder %s227, %s228
      %p242 = scmp.eq.s32.totalorder %s28, 3
      %p243 = por %p241, %p242
      %p245 = scmp.ne.s32.totalorder %s228, %s244
      %p246 = scmp.eq.s32.totalorder %s28, 0
      %p247 = por %p245, %p246
      %p248 = scmp.le.s32.totalorder 1, %s22
      %p249 = scmp.lt.s32.totalorder %s22, 5
      %p250 = pnand %p248, %p249
      %p251 = pneg %p250
      // Predicated region
      $region9: #{tpu_custom_call.1} parent=5 // pred_check
        _
      $region10: #{tpu_custom_call.1} parent=5 // pred_check_branch
        %253 = sbr.rel (%p250) target = $region12
      $region11: #{tpu_custom_call.1} parent=5 // pred_region
        %s254 = ssub.s32 %s22, 1
        // Predicated region
        $region13: #{tpu_custom_call.1} parent=11 // pred_check
          %p255 = pneg %p83
        $region14: #{tpu_custom_call.1} parent=11 // pred_check_branch
          %257 = sbr.rel (%p255) target = $region16
        $region15: #{tpu_custom_call.1} parent=11 // pred_region
          _
        $region16: #{tpu_custom_call.1} parent=11 // pred_fallthru
          _
        // Predicated region
        $region17: #{tpu_custom_call.1} parent=11 // pred_check
          %p258 = pneg %p104
        $region18: #{tpu_custom_call.1} parent=11 // pred_check_branch
          %260 = sbr.rel (%p258) target = $region20
        $region19: #{tpu_custom_call.1} parent=11 // pred_region
          _
        $region20: #{tpu_custom_call.1} parent=11 // pred_fallthru
          _
        // Predicated region
        $region21: #{tpu_custom_call.1} parent=11 // pred_check
          %p261 = pneg %p125
        $region22: #{tpu_custom_call.1} parent=11 // pred_check_branch
          %263 = sbr.rel (%p261) target = $region24
        $region23: #{tpu_custom_call.1} parent=11 // pred_region
          _
        $region24: #{tpu_custom_call.1} parent=11 // pred_fallthru
          _
        // Predicated region
        $region25: #{tpu_custom_call.1} parent=11 // pred_check
          %p264 = pneg %p146
        $region26: #{tpu_custom_call.1} parent=11 // pred_check_branch
          %266 = sbr.rel (%p264) target = $region28
        $region27: #{tpu_custom_call.1} parent=11 // pred_region
          _
        $region28: #{tpu_custom_call.1} parent=11 // pred_fallthru
          _
        // Predicated region
        $region29: #{tpu_custom_call.1} parent=11 // pred_check
          %p267 = pneg %p167
        $region30: #{tpu_custom_call.1} parent=11 // pred_check_branch
          %269 = sbr.rel (%p267) target = $region32
        $region31: #{tpu_custom_call.1} parent=11 // pred_region
          %271 = vsyncadd [#allocation4], 0
          %s272 = sshll.u32 %s5, 4
          %s273 = int_to_ptr.hbm [resolvable:$true] %s272
          %s274 = sshll.u32 [#allocation3], 4
          %s275 = int_to_ptr.vmem [resolvable:$true] %s274
          %280 = dma.hbm_to_vmem [thread:$0]  %s273, 512, %s275, [#allocation4], 128, 128, 8
        $region32: #{tpu_custom_call.1} parent=11 // pred_fallthru
          _
        // Predicated region
        $region33: #{tpu_custom_call.1} parent=11 // pred_check
          %p281 = pneg %p188
        $region34: #{tpu_custom_call.1} parent=11 // pred_check_branch
          %283 = sbr.rel (%p281) target = $region36
        $region35: #{tpu_custom_call.1} parent=11 // pred_region
          _
        $region36: #{tpu_custom_call.1} parent=11 // pred_fallthru
          _
      $region12: #{tpu_custom_call.1} parent=5 // pred_fallthru
        _
      %p284 = scmp.lt.s32.totalorder %s22, 4
      // Predicated region
      $region37: #{tpu_custom_call.1} parent=5 // pred_check
        %p285 = pneg %p284
      $region38: #{tpu_custom_call.1} parent=5 // pred_check_branch
        %287 = sbr.rel (%p285) target = $region40
      $region39: #{tpu_custom_call.1} parent=5 // pred_region
        // Predicated region
        $region41: #{tpu_custom_call.1} parent=39 // pred_check
          %p288 = pneg %p56
        $region42: #{tpu_custom_call.1} parent=39 // pred_check_branch
          %290 = sbr.rel (%p288) target = $region44
        $region43: #{tpu_custom_call.1} parent=39 // pred_region
          %p291 = scmp.lt.s32.totalorder %s29, 1
          %s292 = scalar_select %p291, %s29, 1
          %p293 = scmp.lt.s32.totalorder %s30, 1
          %s294 = scalar_select %p293, %s30, 1
          %s295 = smul.addr %s292, 2
          %s296 = sadd.s32 %s294, %s295
          %s297 = smul.addr %s296, 2
          %s298 = scalar_lea.vmem %s0, %s297
        $region44: #{tpu_custom_call.1} parent=39 // pred_fallthru
          _
      $region40: #{tpu_custom_call.1} parent=5 // pred_fallthru
        _
      %p299 = scmp.le.s32.totalorder 1, %s22
      %p300 = scmp.lt.s32.totalorder %s22, 5
      %p301 = pnand %p299, %p300
      %p302 = pneg %p301
      // Predicated region
      $region45: #{tpu_custom_call.1} parent=5 // pred_check
        _
      $region46: #{tpu_custom_call.1} parent=5 // pred_check_branch
        %304 = sbr.rel (%p301) target = $region48
      $region47: #{tpu_custom_call.1} parent=5 // pred_region
        %s305 = ssub.s32 %s22, 1
        // Predicated region
        $region49: #{tpu_custom_call.1} parent=47 // pred_check
          %p306 = pneg %p167
        $region50: #{tpu_custom_call.1} parent=47 // pred_check_branch
          %308 = sbr.rel (%p306) target = $region52
        $region51: #{tpu_custom_call.1} parent=47 // pred_region
          %310 = dma.done [#allocation4], 512
        $region52: #{tpu_custom_call.1} parent=47 // pred_fallthru
          _
        %p311 = scmp.lt.s32.totalorder %s31, 1
        %s312 = scalar_select %p311, %s31, 1
        %p313 = scmp.lt.s32.totalorder %s32, 1
        %s314 = scalar_select %p313, %s32, 1
        %s315 = smul.addr %s312, 2
        %s316 = sadd.s32 %s314, %s315
        %s317 = smul.addr %s316, 2
        %s318 = scalar_lea.vmem %s0, %s317
        %p319 = pneg %p62
        %p320 = pneg %p59
        %p321 = pneg %p83
        %p322 = pneg %p80
        %p323 = pneg %p104
        %p324 = pneg %p101
        %p325 = pneg %p125
        %p326 = pneg %p122
        %p327 = pneg %p146
        %p328 = pneg %p143
        %p329 = pneg %p167
        %p330 = pneg %p164
        %p331 = pneg %p188
        %p332 = pneg %p185
        %p333 = pneg %p214
        %p334 = pneg %p211
        %s335 = sand.u32 %s201, 1
        %s336 = scalar_lea.sflag [#allocation5], %s335
        %s337 = sand.u32 %s201, 1
        %s338 = scalar_lea.vmem [#allocation6], %s337
        %p339 = pneg %p240
        %p340 = pneg %p237
        %s341 = sand.u32 %s227, 1
        %s342 = scalar_lea.sflag [#allocation8], %s341
        %s343 = sand.u32 %s227, 1
        %s344 = scalar_lea.vmem [#allocation7], %s343
        %p345 = scmp.lt.s32.totalorder %s31, 1
        %s346 = scalar_select %p345, %s31, 1
        %p347 = scmp.lt.s32.totalorder %s32, 1
        %s348 = scalar_select %p347, %s32, 1
        %s349 = smul.addr %s346, 2
        %s350 = sadd.s32 %s348, %s349
        %s351 = smul.addr %s350, 2
        %s352 = scalar_lea.vmem %s0, %s351
        %p354 = scmp.eq.s32.totalorder %s32, 0
        // Predicated region
        $region53: #{tpu_custom_call.1} parent=47 // pred_check
          %p355 = pneg %p354
        $region54: #{tpu_custom_call.1} parent=47 // pred_check_branch
          %357 = sbr.rel (%p355) target = $region56
        $region55: #{tpu_custom_call.1} parent=47 // pred_region
          %vm358 = vcmask 7168
          %359 = vst.msk [vmem:[#allocation2] sm:$0xff] %vm358, -inf
        $region56: #{tpu_custom_call.1} parent=47 // pred_fallthru
          _
        %v360 = vld [vmem:[%s1] sm:$0xf]
        %v361 = vld [vmem:[%s352] sm:$0x3]
        %vm362 = vcmask 31744
        %v364 = vsel %vm362, %v360, 0
        %vm366 = vcmask 1041408
        %v368 = vsel %vm366, %v361, 0
        %370 = vmatpush.bf16.msra.mxu0 0
        %371 = vmatpush.bf16.msra.mxu0 0
        %372 = vmatpush.bf16.msra.mxu0 0
        %373 = vmatpush.bf16.msra.mxu0 0
        %374 = vmatpush.bf16.msra.mxu0 0
        %375 = vmatpush.bf16.msra.mxu0 0
        %376 = vmatpush.bf16.msra.mxu0 0
        %377 = vmatpush.bf16.msra.mxu0 %v368
        %378 = vmatmul.bf16.gmra.mxu0 %v364
        %v379 = vpop.f32.mrf.mxu0
        %v380 = vadd.f32 0.0, %v379
        %v381 = vpop.f32.mrf.mxu0
        %382 = vdwg.mxu0
        %v383 = vld [vmem:[#allocation2] sm:$0xff]
        %384 = vmax.xlane.f32.xlu0 %v380
        %v385 = vpop.xlane.xlu0 %384
        %v386 = vmax.f32 %v383, %v385
        %vm387 = vcmask 7168
        %388 = vst.msk [vmem:[#allocation2] sm:$0xff] %vm387, %v386
        %p389 = scmp.eq.s32.totalorder %s32, 1
        // Predicated region
        $region57: #{tpu_custom_call.1} parent=47 // pred_check
          %p390 = pneg %p389
        $region58: #{tpu_custom_call.1} parent=47 // pred_check_branch
          %392 = sbr.rel (%p390) target = $region60
        $region59: #{tpu_custom_call.1} parent=47 // pred_region
          %v393 = vld [vmem:[#allocation2] sm:$0xff]
          %v394 = vld [vmem:[%s2] sm:$0xff]
          %v395 = vadd.f32 %v393, %v394
          %v396 = vmax.f32 %v395, 0.0
          %v397 = vld [vmem:[%s3] sm:$0xff]
          %399 = vset.pattern.permute.xlu0 0
          %400 = vperm.xlu0 %399, %v396
          %v401 = vpop.permute.xlu0 %400
          %v403 = vmul.f32 %v401, %v397
          %vm404 = vcmask 261120
          %v405 = vsel %vm404, %v403, 0.0
          %v406 = vrot.slane %v405, 4
          %v407 = vadd.f32 %v405, %v406
          %v408 = vrot.slane %v407, 2
          %v409 = vadd.f32 %v407, %v408
          %v410 = vrot.slane %v409, 1
          %v411 = vadd.f32 %v409, %v410
          %v412 = vld [vmem:[%s4] sm:$0x1]
          %v413 = vadd.f32 %v411, %v412
          %v414 = vmax.f32 %v413, 0.0
          %v415 = vld [vmem:[#allocation3] sm:$0xff]
          %v416 = vld [vmem:[#allocation3 + $0x8] sm:$0xff]
          %v417 = vld [vmem:[#allocation3 + $0x10] sm:$0xff]
          %v418 = vld [vmem:[#allocation3 + $0x18] sm:$0xff]
          %v419 = vld [vmem:[%s6] sm:$0x1]
          %v421 = vsel %vm404, %v414, 0
          %423 = vmatpush.msra.mxu0 0.0
          %424 = vmatpush.msra.mxu0 0.0
          %425 = vmatpush.msra.mxu0 0.0
          %426 = vmatpush.msra.mxu0 0.0
          %427 = vmatpush.msra.mxu0 0.0
          %428 = vmatpush.msra.mxu0 0.0
          %429 = vmatpush.msra.mxu0 0.0
          %430 = vmatpush.msra.mxu0 0.0
          %431 = vmatpush.msra.mxu0 0.0
          %432 = vmatpush.msra.mxu0 0.0
          %433 = vmatpush.msra.mxu0 0.0
          %434 = vmatpush.msra.mxu0 0.0
          %435 = vmatpush.msra.mxu0 %v418
          %436 = vmatpush.msra.mxu0 %v417
          %437 = vmatpush.msra.mxu0 %v416
          %438 = vmatpush.msra.mxu0 %v415
          %439 = vmatmul.f32.gmra.mxu0 %v421
          %v440 = vpop.f32.mrf.mxu0
          %v441 = vadd.f32 %v419, %v440
          %442 = vdwg.mxu0
          %443 = vst [vmem:[%s338] sm:$0x1] %v441
          %v444 = vlaneseq
          %v445 = vand.u32 %v444, 127
          %vm446 = vcmp.lt.s32.totalorder %v445, 10
          %v447 = vsel %vm446, %v441, -inf
          %vm448 = vcmask 1040384
          %v449 = vsel %vm448, %v447, -inf
          %450 = vmax.xlane.f32.xlu0 %v449
          %v451 = vpop.xlane.xlu0 %450
          %v452 = vsub.f32 %v441, %v451
          %v453 = vmul.f32 %v452, 1.442695
          %v454 = vpow.pop %v453
          %v455 = vsel %vm446, %v454, 0.0
          %v456 = vsel %vm448, %v455, 0.0
          %457 = vadd.xlane.f32.xlu0 %v456
          %v458 = vpop.xlane.xlu0 %457
          %v459 = vrcp.pop %v458
          %v460 = vmul.f32 %v455, %v459
          %461 = vst [vmem:[%s344] sm:$0x1] %v460
        $region60: #{tpu_custom_call.1} parent=47 // pred_fallthru
          _
        %s462 = sand.u32 %s201, 1
        %s463 = scalar_lea.sflag [#allocation5], %s462
        %s464 = sand.u32 %s201, 1
        %s465 = scalar_lea.vmem [#allocation6], %s464
        %s466 = sand.u32 %s227, 1
        %s467 = scalar_lea.sflag [#allocation8], %s466
        %s468 = sand.u32 %s227, 1
        %s469 = scalar_lea.vmem [#allocation7], %s468
        // Predicated region
        $region61: #{tpu_custom_call.1} parent=47 // pred_check
          %p470 = pneg %p211
        $region62: #{tpu_custom_call.1} parent=47 // pred_check_branch
          %472 = sbr.rel (%p470) target = $region64
        $region63: #{tpu_custom_call.1} parent=47 // pred_region
          %474 = vsyncadd %s463, 0
          %s475 = scalar_lea.hbm %s7, %s31
          %s477 = sshll.u32 %s465, 4
          %s478 = int_to_ptr.vmem [resolvable:$true] %s477
          %s479 = sshll.u32 %s475, 4
          %s480 = int_to_ptr.hbm [resolvable:$true] %s479
          %482 = dma.vmem_to_hbm [thread:$0]  %s478, 16, %s480, %s463
        $region64: #{tpu_custom_call.1} parent=47 // pred_fallthru
          _
        // Predicated region
        $region65: #{tpu_custom_call.1} parent=47 // pred_check
          %p483 = pneg %p237
        $region66: #{tpu_custom_call.1} parent=47 // pred_check_branch
          %485 = sbr.rel (%p483) target = $region68
        $region67: #{tpu_custom_call.1} parent=47 // pred_region
          %487 = vsyncadd %s467, 0
          %s488 = scalar_lea.hbm %s8, %s31
          %s490 = sshll.u32 %s469, 4
          %s491 = int_to_ptr.vmem [resolvable:$true] %s490
          %s492 = sshll.u32 %s488, 4
          %s493 = int_to_ptr.hbm [resolvable:$true] %s492
          %495 = dma.vmem_to_hbm [thread:$0]  %s491, 16, %s493, %s467
        $region68: #{tpu_custom_call.1} parent=47 // pred_fallthru
          _
      $region48: #{tpu_custom_call.1} parent=5 // pred_fallthru
        _
      %p496 = scmp.le.s32.totalorder 2, %s22
      // Predicated region
      $region69: #{tpu_custom_call.1} parent=5 // pred_check
        %p497 = pneg %p496
      $region70: #{tpu_custom_call.1} parent=5 // pred_check_branch
        %499 = sbr.rel (%p497) target = $region72
      $region71: #{tpu_custom_call.1} parent=5 // pred_region
        %s500 = ssub.s32 %s22, 2
        // Predicated region
        $region73: #{tpu_custom_call.1} parent=71 // pred_check
          %p501 = pneg %p217
        $region74: #{tpu_custom_call.1} parent=71 // pred_check_branch
          %503 = sbr.rel (%p501) target = $region76
        $region75: #{tpu_custom_call.1} parent=71 // pred_region
          %s504 = sand.u32 %s202, 1
          %s505 = scalar_lea.sflag [#allocation5], %s504
          %s506 = sand.u32 %s202, 1
          %s507 = scalar_lea.vmem [#allocation6], %s506
          %509 = dma.done %s505, 16
        $region76: #{tpu_custom_call.1} parent=71 // pred_fallthru
          _
        // Predicated region
        $region77: #{tpu_custom_call.1} parent=71 // pred_check
          %p510 = pneg %p243
        $region78: #{tpu_custom_call.1} parent=71 // pred_check_branch
          %512 = sbr.rel (%p510) target = $region80
        $region79: #{tpu_custom_call.1} parent=71 // pred_region
          %s513 = sand.u32 %s228, 1
          %s514 = scalar_lea.sflag [#allocation8], %s513
          %s515 = sand.u32 %s228, 1
          %s516 = scalar_lea.vmem [#allocation7], %s515
          %518 = dma.done %s514, 16
        $region80: #{tpu_custom_call.1} parent=71 // pred_fallthru
          _
      $region72: #{tpu_custom_call.1} parent=5 // pred_fallthru
        _
    $region6: #{tpu_custom_call.1} parent=1 // loop_footer
      %s26 = sadd.s32 1, %s22
    $region7: #{tpu_custom_call.1} parent=1 // loop_footer_branch
      %21 = sbr.rel target = $region3
    $region8: #{tpu_custom_call.1} parent=1 // loop_exit
      _
    %519 = vsyncpa [#allocation4], 1
    %s520 = scalar_lea.sflag [#allocation4], 1
    %521 = vsyncpa %s520, 1
    %522 = vsyncpa [#allocation5], 1
    %s523 = scalar_lea.sflag [#allocation5], 1
    %524 = vsyncpa %s523, 1
    %525 = vsyncpa [#allocation8], 1
    %s526 = scalar_lea.sflag [#allocation8], 1
    %527 = vsyncpa %s526, 1

</llo_original>
